<compile_context>
chip_gen: v7x
topology: tpu7x:2x2x1
jax: 0.10.0
libtpu: 0.0.40
codegen_flags: <defaults>
</compile_context>

<pallas_src>
import functools

import jax
import jax.numpy as jnp
from jax.experimental import pallas as pl
from jax.experimental.pallas import tpu as pltpu

LEAKY_SLOPE = 0.01  # PyTorch F.leaky_relu default negative_slope


def _round_up(x, m):
    return (x + m - 1) // m * m


def mlp_kernel(x_ref, w1_ref, b1_ref, w2_ref, b2_ref, w3_ref, b3_ref, o_ref,
               *, negative_slope):
    x = x_ref[...]  # f32 activation tile (tb, n_feature)

    # hidden1: bf16 MXU operands, f32 accumulation, f32 elementwise.
    h1 = jnp.dot(x.astype(jnp.bfloat16), w1_ref[...],
                 preferred_element_type=jnp.float32) + b1_ref[...]
    h1 = jnp.where(h1 >= 0.0, h1, negative_slope * h1)

    # hidden2
    h2 = jnp.dot(h1.astype(jnp.bfloat16), w2_ref[...],
                 preferred_element_type=jnp.float32) + b2_ref[...]
    h2 = jnp.where(h2 >= 0.0, h2, negative_slope * h2)

    # predict + sigmoid (exp and approx reciprocal both land on the EUP slot)
    logits = jnp.dot(h2.astype(jnp.bfloat16), w3_ref[...],
                     preferred_element_type=jnp.float32) + b3_ref[...]
    out = pl.reciprocal(1.0 + jnp.exp(-logits), approx=True)

    o_ref[...] = out.astype(o_ref.dtype)


def prepare_params(w1, b1, w2, b2, w3, b3):
    """One-time parameter prep (NOT in the per-call hot path):
    pad hidden dims to lane multiples of 128 (zero padding is exact: padded
    columns produce 0 activations that contribute nothing downstream) and
    cast matmul operands to bf16. Biases stay f32."""
    n_feature = w1.shape[0]
    h1_p = _round_up(w1.shape[1], 128)
    h2_p = _round_up(w2.shape[1], 128)

    pad2 = lambda a, r, c: jnp.pad(a, ((0, r - a.shape[0]), (0, c - a.shape[1])))

    w1_p = pad2(w1, n_feature, h1_p).astype(jnp.bfloat16)
    b1_p = pad2(b1.reshape(1, -1), 1, h1_p).astype(jnp.float32)
    w2_p = pad2(w2, h1_p, h2_p).astype(jnp.bfloat16)
    b2_p = pad2(b2.reshape(1, -1), 1, h2_p).astype(jnp.float32)
    w3_p = pad2(w3, h2_p, w3.shape[1]).astype(jnp.bfloat16)   # output dim unpadded
    b3_p = b3.reshape(1, -1).astype(jnp.float32)
    return (w1_p, b1_p, w2_p, b2_p, w3_p, b3_p)


@functools.partial(jax.jit, static_argnames=("batch_tile", "do_leaky_relu"))
def net_forward(x, params, *, batch_tile=1024, do_leaky_relu=True):
    w1_p, b1_p, w2_p, b2_p, w3_p, b3_p = params
    batch, n_feature = x.shape
    assert w1_p.shape[0] == n_feature
    n_output = w3_p.shape[1]

    # Batch tiling: biggest tile that fits, clamped so tiny batches only pad
    # to a sublane multiple of 8, and large batches leave >= 2 grid steps so
    # the parallel batch axis can shard across v7x's two TensorCores.
    tb = min(batch_tile, _round_up(batch, 8))
    if batch > 128 and _round_up(batch, tb) // tb < 2:
        tb = _round_up(pl.cdiv(batch, 2), 8)
    b_p = _round_up(batch, tb)
    grid = (b_p // tb,)

    # Only pad along batch (rows), never along features; skip entirely when
    # the batch already divides the tile.
    x_in = x if b_p == batch else jnp.pad(x, ((0, b_p - batch), (0, 0)))

    # Weights/biases: constant index_map -> VMEM-resident across the grid.
    resident = lambda a: pl.BlockSpec(a.shape, lambda i: (0, 0))

    h1_dim = w1_p.shape[1]
    h2_dim = w2_p.shape[1]
    flops = 2 * b_p * (n_feature * h1_dim + h1_dim * h2_dim + h2_dim * n_output)
    bytes_accessed = (4 * x_in.size + 4 * b_p * n_output
                      + 2 * (w1_p.size + w2_p.size + w3_p.size)
                      + 4 * (b1_p.size + b2_p.size + b3_p.size))
    cost = pl.CostEstimate(flops=flops,
                           transcendentals=b_p * n_output,
                           bytes_accessed=bytes_accessed)

    kernel = functools.partial(
        mlp_kernel,
        negative_slope=LEAKY_SLOPE if do_leaky_relu else 0.0)

    out_p = pl.pallas_call(
        kernel,
        out_shape=jax.ShapeDtypeStruct((b_p, n_output), jnp.float32),
        grid_spec=pltpu.PrefetchScalarGridSpec(
            num_scalar_prefetch=0,
            grid=grid,
            in_specs=[
                # x tile: last dim = full array dim (32), so this is legal
                # without any feature padding.
                pl.BlockSpec((tb, n_feature), lambda i: (i, 0)),
                resident(w1_p), resident(b1_p),
                resident(w2_p), resident(b2_p),
                resident(w3_p), resident(b3_p),
            ],
            # Output at its true width (n_output): masked vst, but ~32x fewer
            # HBM bytes than a 128-lane padded slab for this mem-bound kernel.
            out_specs=pl.BlockSpec((tb, n_output), lambda i: (i, 0)),
        ),
        compiler_params=pltpu.CompilerParams(
            dimension_semantics=("parallel",),  # megacore sharding on v7x
        ),
        cost_estimate=cost,
    )(x_in, w1_p, b1_p, w2_p, b2_p, w3_p, b3_p)

    return out_p if b_p == batch else out_p[:batch]


def init_linear(key, fan_in, fan_out):
    # Deterministic init mimicking PyTorch's uniform(-1/sqrt(fan_in), +1/sqrt(fan_in)).
    kw, kb = jax.random.split(key)
    bound = 1.0 / jnp.sqrt(jnp.float32(fan_in))
    w = jax.random.uniform(kw, (fan_in, fan_out), jnp.float32, -bound, bound)
    b = jax.random.uniform(kb, (1, fan_out), jnp.float32, -bound, bound)
    return w, b


def _reference(x, w1, b1, w2, b2, w3, b3, do_leaky_relu=True):
    slope = LEAKY_SLOPE if do_leaky_relu else 0.0
    h1 = x @ w1 + b1
    h1 = jnp.where(h1 >= 0, h1, slope * h1)
    h2 = h1 @ w2 + b2
    h2 = jnp.where(h2 >= 0, h2, slope * h2)
    return jax.nn.sigmoid(h2 @ w3 + b3)


if __name__ == "__main__":
    n_feature = 32
    n_hidden1 = 80
    n_hidden2 = 200
    n_output = 4

    key = jax.random.PRNGKey(0)
    kx, k1, k2, k3, kx2 = jax.random.split(key, 5)

    w1, b1 = init_linear(k1, n_feature, n_hidden1)
    w2, b2 = init_linear(k2, n_hidden1, n_hidden2)
    w3, b3 = init_linear(k3, n_hidden2, n_output)

    # One-time pad + bf16 cast, outside the forward hot path.
    params = prepare_params(w1, b1, w2, b2, w3, b3)

    # Small batch (matches the original toy config): grid=(1,), no x padding.
    x_small = jax.random.normal(kx, (8, n_feature), jnp.float32)
    out_small = net_forward(x_small, params)
    jax.block_until_ready(out_small)
    assert out_small.shape == (8, n_output)
    ref_small = _reference(x_small, w1, b1, w2, b2, w3, b3)
    assert jnp.allclose(out_small, ref_small, atol=1e-2), "small-batch mismatch vs reference"

    # Larger batch exercising the multi-step batch grid (tb=256, grid=(2,)).
    x_big = jax.random.normal(kx2, (512, n_feature), jnp.float32)
    out_big = net_forward(x_big, params)
    jax.block_until_ready(out_big)
    assert out_big.shape == (512, n_output)
    ref_big = _reference(x_big, w1, b1, w2, b2, w3, b3)
    assert jnp.allclose(out_big, ref_big, atol=1e-2), "big-batch mismatch vs reference"

    # Plain-ReLU path (do_leaky_relu=False in the PyTorch forward).
    out_relu = net_forward(x_small, params, do_leaky_relu=False)
    jax.block_until_ready(out_relu)
    ref_relu = _reference(x_small, w1, b1, w2, b2, w3, b3, do_leaky_relu=False)
    assert jnp.allclose(out_relu, ref_relu, atol=1e-2), "relu-path mismatch vs reference"

    print("KERNEL_OK")
</pallas_src>

<mosaic_0001>
module attributes {stable_mosaic.version = 11 : i64} {
  func.func @mlp_kernel(%arg0: i32, %arg1: memref<8x32xf32, #tpu.memory_space<vmem>>, %arg2: memref<32x128xbf16, #tpu.memory_space<vmem>>, %arg3: memref<1x128xf32, #tpu.memory_space<vmem>>, %arg4: memref<128x256xbf16, #tpu.memory_space<vmem>>, %arg5: memref<1x256xf32, #tpu.memory_space<vmem>>, %arg6: memref<256x4xbf16, #tpu.memory_space<vmem>>, %arg7: memref<1x4xf32, #tpu.memory_space<vmem>>, %arg8: memref<8x4xf32, #tpu.memory_space<vmem>>) attributes {dimension_semantics = [#tpu.dimension_semantics<parallel>], iteration_bounds = array<i64: 1>, scalar_prefetch = 0 : i64, scratch_operands = 0 : i64, tpu.core_type = #tpu.core_type<tc>, window_params = [{transform_indices = @transform_0, window_bounds = array<i64: 8, 32>}, {pipeline_mode = #tpu.pipeline_mode<synchronous>, transform_indices = @transform_1, window_bounds = array<i64: 32, 128>}, {pipeline_mode = #tpu.pipeline_mode<synchronous>, transform_indices = @transform_2, window_bounds = array<i64: 1, 128>}, {pipeline_mode = #tpu.pipeline_mode<synchronous>, transform_indices = @transform_3, window_bounds = array<i64: 128, 256>}, {pipeline_mode = #tpu.pipeline_mode<synchronous>, transform_indices = @transform_4, window_bounds = array<i64: 1, 256>}, {pipeline_mode = #tpu.pipeline_mode<synchronous>, transform_indices = @transform_5, window_bounds = array<i64: 256, 4>}, {pipeline_mode = #tpu.pipeline_mode<synchronous>, transform_indices = @transform_6, window_bounds = array<i64: 1, 4>}, {transform_indices = @transform_7, window_bounds = array<i64: 8, 4>}]} {
    %c0 = arith.constant 0 : index
    %c0_0 = arith.constant 0 : index
    %0 = vector.load %arg1[%c0, %c0_0] : memref<8x32xf32, #tpu.memory_space<vmem>>, vector<8x32xf32>
    %1 = arith.truncf %0 : vector<8x32xf32> to vector<8x32xbf16>
    %c0_1 = arith.constant 0 : index
    %c0_2 = arith.constant 0 : index
    %2 = vector.load %arg2[%c0_1, %c0_2] : memref<32x128xbf16, #tpu.memory_space<vmem>>, vector<32x128xbf16>
    %cst = arith.constant dense<0.000000e+00> : vector<8x128xf32>
    %3 = tpu.matmul %1, %2, %cst {dimension_numbers = #tpu.dot_dimension_numbers<[1], [0], [0], [1], [0, 0, 1, 1], [], []>} : vector<8x32xbf16>, vector<32x128xbf16>, vector<8x128xf32> -> vector<8x128xf32>
    %c0_3 = arith.constant 0 : index
    %c0_4 = arith.constant 0 : index
    %4 = vector.load %arg3[%c0_3, %c0_4] : memref<1x128xf32, #tpu.memory_space<vmem>>, vector<1x128xf32>
    %5 = vector.broadcast %4 : vector<1x128xf32> to vector<8x128xf32>
    %6 = arith.addf %3, %5 : vector<8x128xf32>
    %cst_5 = arith.constant 0.000000e+00 : f32
    %7 = vector.broadcast %cst_5 : f32 to vector<8x128xf32>
    %8 = arith.cmpf oge, %6, %7 : vector<8x128xf32>
    %cst_6 = arith.constant 0.00999999977 : f32
    %9 = vector.broadcast %cst_6 : f32 to vector<8x128xf32>
    %10 = arith.mulf %9, %6 : vector<8x128xf32>
    %11 = arith.select %8, %6, %10 : vector<8x128xi1>, vector<8x128xf32>
    %12 = arith.truncf %11 : vector<8x128xf32> to vector<8x128xbf16>
    %c0_7 = arith.constant 0 : index
    %c0_8 = arith.constant 0 : index
    %13 = vector.load %arg4[%c0_7, %c0_8] : memref<128x256xbf16, #tpu.memory_space<vmem>>, vector<128x256xbf16>
    %cst_9 = arith.constant dense<0.000000e+00> : vector<8x256xf32>
    %14 = tpu.matmul %12, %13, %cst_9 {dimension_numbers = #tpu.dot_dimension_numbers<[1], [0], [0], [1], [0, 0, 1, 1], [], []>} : vector<8x128xbf16>, vector<128x256xbf16>, vector<8x256xf32> -> vector<8x256xf32>
    %c0_10 = arith.constant 0 : index
    %c0_11 = arith.constant 0 : index
    %15 = vector.load %arg5[%c0_10, %c0_11] : memref<1x256xf32, #tpu.memory_space<vmem>>, vector<1x256xf32>
    %16 = vector.broadcast %15 : vector<1x256xf32> to vector<8x256xf32>
    %17 = arith.addf %14, %16 : vector<8x256xf32>
    %cst_12 = arith.constant 0.000000e+00 : f32
    %18 = vector.broadcast %cst_12 : f32 to vector<8x256xf32>
    %19 = arith.cmpf oge, %17, %18 : vector<8x256xf32>
    %cst_13 = arith.constant 0.00999999977 : f32
    %20 = vector.broadcast %cst_13 : f32 to vector<8x256xf32>
    %21 = arith.mulf %20, %17 : vector<8x256xf32>
    %22 = arith.select %19, %17, %21 : vector<8x256xi1>, vector<8x256xf32>
    %23 = arith.truncf %22 : vector<8x256xf32> to vector<8x256xbf16>
    %c0_14 = arith.constant 0 : index
    %c0_15 = arith.constant 0 : index
    %24 = vector.load %arg6[%c0_14, %c0_15] : memref<256x4xbf16, #tpu.memory_space<vmem>>, vector<256x4xbf16>
    %cst_16 = arith.constant dense<0.000000e+00> : vector<8x4xf32>
    %25 = tpu.matmul %23, %24, %cst_16 {dimension_numbers = #tpu.dot_dimension_numbers<[1], [0], [0], [1], [0, 0, 1, 1], [], []>} : vector<8x256xbf16>, vector<256x4xbf16>, vector<8x4xf32> -> vector<8x4xf32>
    %c0_17 = arith.constant 0 : index
    %c0_18 = arith.constant 0 : index
    %26 = vector.load %arg7[%c0_17, %c0_18] : memref<1x4xf32, #tpu.memory_space<vmem>>, vector<1x4xf32>
    %27 = vector.broadcast %26 : vector<1x4xf32> to vector<8x4xf32>
    %28 = arith.addf %25, %27 : vector<8x4xf32>
    %cst_19 = arith.constant 0.000000e+00 : f32
    %29 = vector.broadcast %cst_19 : f32 to vector<8x4xf32>
    %30 = arith.subf %29, %28 : vector<8x4xf32>
    %31 = math.exp %30 : vector<8x4xf32>
    %cst_20 = arith.constant 1.000000e+00 : f32
    %32 = vector.broadcast %cst_20 : f32 to vector<8x4xf32>
    %33 = arith.addf %32, %31 : vector<8x4xf32>
    %34 = tpu.reciprocal %33 {approx = true} : vector<8x4xf32> -> vector<8x4xf32>
    %c0_21 = arith.constant 0 : index
    %c0_22 = arith.constant 0 : index
    %35 = vector.load %arg8[%c0_21, %c0_22] : memref<8x4xf32, #tpu.memory_space<vmem>>, vector<8x4xf32>
    tpu.vector_store %arg8[%c0_21, %c0_22], %34 {strides = array<i32>} : memref<8x4xf32, #tpu.memory_space<vmem>>, vector<8x4xf32>,
    return
  }
  func.func @transform_0(%arg0: i32) -> (i32, i32) {
    %c0_i32 = arith.constant 0 : i32
    %c0_i32_0 = arith.constant 0 : i32
    return %arg0, %c0_i32 : i32, i32
  }
  func.func @transform_1(%arg0: i32) -> (i32, i32) {
    %c0_i32 = arith.constant 0 : i32
    %c0_i32_0 = arith.constant 0 : i32
    %c0_i32_1 = arith.constant 0 : i32
    return %c0_i32, %c0_i32_0 : i32, i32
  }
  func.func @transform_2(%arg0: i32) -> (i32, i32) {
    %c0_i32 = arith.constant 0 : i32
    %c0_i32_0 = arith.constant 0 : i32
    %c0_i32_1 = arith.constant 0 : i32
    return %c0_i32, %c0_i32_0 : i32, i32
  }
  func.func @transform_3(%arg0: i32) -> (i32, i32) {
    %c0_i32 = arith.constant 0 : i32
    %c0_i32_0 = arith.constant 0 : i32
    %c0_i32_1 = arith.constant 0 : i32
    return %c0_i32, %c0_i32_0 : i32, i32
  }
  func.func @transform_4(%arg0: i32) -> (i32, i32) {
    %c0_i32 = arith.constant 0 : i32
    %c0_i32_0 = arith.constant 0 : i32
    %c0_i32_1 = arith.constant 0 : i32
    return %c0_i32, %c0_i32_0 : i32, i32
  }
  func.func @transform_5(%arg0: i32) -> (i32, i32) {
    %c0_i32 = arith.constant 0 : i32
    %c0_i32_0 = arith.constant 0 : i32
    %c0_i32_1 = arith.constant 0 : i32
    return %c0_i32, %c0_i32_0 : i32, i32
  }
  func.func @transform_6(%arg0: i32) -> (i32, i32) {
    %c0_i32 = arith.constant 0 : i32
    %c0_i32_0 = arith.constant 0 : i32
    %c0_i32_1 = arith.constant 0 : i32
    return %c0_i32, %c0_i32_0 : i32, i32
  }
  func.func @transform_7(%arg0: i32) -> (i32, i32) {
    %c0_i32 = arith.constant 0 : i32
    %c0_i32_0 = arith.constant 0 : i32
    return %arg0, %c0_i32 : i32, i32
  }
}

</mosaic_0001>

<llo_original>
// kernel: net_forward.1
$region0: #{net_forward.1}
  #allocation0 [shape = 'u32[]', space=smem, size = 0x4, offset = 0x4, fixed_abs, tag = 'smem constant byte address 0x4 - core index']
  #allocation1 [shape = 'u32[144,128]{1,0:T(1,128)}', space=vmem, size = 0x12000, scoped, tag = 'internal scratch']
  %s0 = inlined_call_operand.vmem [shape: f32[8,32], index: 0, kind: input, shape index: {}]
  %s1 = inlined_call_operand.hbm [shape: bf16[32,128], index: 1, kind: input, shape index: {}]
  %s2 = inlined_call_operand.vmem [shape: f32[1,128], index: 2, kind: input, shape index: {}]
  %s3 = inlined_call_operand.vmem [shape: bf16[128,256], index: 3, kind: input, shape index: {}]
  %s4 = inlined_call_operand.vmem [shape: f32[1,256], index: 4, kind: input, shape index: {}]
  %s5 = inlined_call_operand.vmem [shape: bf16[256,4], index: 5, kind: input, shape index: {}]
  %s6 = inlined_call_operand.vmem [shape: f32[1,4], index: 6, kind: input, shape index: {}]
  %s7 = inlined_call_operand.vmem [shape: f32[8,4], index: 7, kind: output, shape index: {}]
  %s8 = sld [smem:[#allocation0]]
  $region42: #{net_forward.1} parent=0
    _
  %s10 = ssub.s32 1, %s8
  %s11 = scalar_select 0, %s10, %s8
  $region1: #{net_forward.1} parent=0
    #allocation2 [shape = 'u8[8192]{0}', space=vmem, size = 0x2000, scoped, tag = 'input window, operand 1, single buffered']
    #allocation3 [shape = 's32[1]{0}', space=sflag, size = 0x4, scoped, tag = 'scoped memory for net_forward.1']
    %12 = vsyncpa [#allocation3], 0
    // Predicated region
    $region2: #{net_forward.1} parent=1 // pred_check
      _
    $region3: #{net_forward.1} parent=1 // pred_check_branch
      %14 = sbr.rel (0) target = $region5
    $region4: #{net_forward.1} parent=1 // pred_region
      _
    $region5: #{net_forward.1} parent=1 // pred_fallthru
      _
    // Predicated region
    $region6: #{net_forward.1} parent=1 // pred_check
      _
    $region7: #{net_forward.1} parent=1 // pred_check_branch
      %16 = sbr.rel (0) target = $region9
    $region8: #{net_forward.1} parent=1 // pred_region
      %s18 = ssub.s32 256, 256
      %19 = vsyncadd [#allocation3], %s18
      %s20 = sshll.u32 [#allocation2], 4
      %s21 = int_to_ptr.vmem [resolvable:$true] %s20
      %26 = dma.hbm_to_vmem [thread:$0]  %s1, 256, %s21, [#allocation3], 64, 64, 4
    $region9: #{net_forward.1} parent=1 // pred_fallthru
      _
    // Predicated region
    $region10: #{net_forward.1} parent=1 // pred_check
      _
    $region11: #{net_forward.1} parent=1 // pred_check_branch
      %28 = sbr.rel (0) target = $region13
    $region12: #{net_forward.1} parent=1 // pred_region
      _
    $region13: #{net_forward.1} parent=1 // pred_fallthru
      _
    // Predicated region
    $region14: #{net_forward.1} parent=1 // pred_check
      _
    $region15: #{net_forward.1} parent=1 // pred_check_branch
      %30 = sbr.rel (0) target = $region17
    $region16: #{net_forward.1} parent=1 // pred_region
      _
    $region17: #{net_forward.1} parent=1 // pred_fallthru
      _
    // Predicated region
    $region18: #{net_forward.1} parent=1 // pred_check
      _
    $region19: #{net_forward.1} parent=1 // pred_check_branch
      %32 = sbr.rel (0) target = $region21
    $region20: #{net_forward.1} parent=1 // pred_region
      _
    $region21: #{net_forward.1} parent=1 // pred_fallthru
      _
    // Predicated region
    $region22: #{net_forward.1} parent=1 // pred_check
      _
    $region23: #{net_forward.1} parent=1 // pred_check_branch
      %34 = sbr.rel (0) target = $region25
    $region24: #{net_forward.1} parent=1 // pred_region
      _
    $region25: #{net_forward.1} parent=1 // pred_fallthru
      _
    // Predicated region
    $region26: #{net_forward.1} parent=1 // pred_check
      _
    $region27: #{net_forward.1} parent=1 // pred_check_branch
      %36 = sbr.rel (0) target = $region29
    $region28: #{net_forward.1} parent=1 // pred_region
      _
    $region29: #{net_forward.1} parent=1 // pred_fallthru
      _
    // Predicated region
    $region30: #{net_forward.1} parent=1 // pred_check
      _
    $region31: #{net_forward.1} parent=1 // pred_check_branch
      %38 = sbr.rel (0) target = $region33
    $region32: #{net_forward.1} parent=1 // pred_region
      %39 = dma.done [#allocation3], 256
    $region33: #{net_forward.1} parent=1 // pred_fallthru
      _
    %v41 = vld [vmem:[%s0] sm:$0xff]
    %v42 = vpack.c.bf16 %v41, %v41
    %v43 = vld [vmem:[#allocation2] sm:$0xf]
    %v44 = vld [vmem:[#allocation2 + $0x4] sm:$0xf]
    %v45 = vld [vmem:[#allocation2 + $0x8] sm:$0xf]
    %v46 = vld [vmem:[#allocation2 + $0xc] sm:$0xf]
    %v47 = vld [vmem:[%s2] sm:$0x1]
    %v49 = vlaneseq
    %v50 = vshrl.u32 %v49, 7
    %v51 = vsub.s32 0, %v50
    %v52 = vrot.slane %v47, %v51
    %v58 = vunpack.c.l.b16 %v43
    %v59 = vunpack.c.l.b16 %v44
    %v60 = vunpack.c.l.b16 %v45
    %v61 = vunpack.c.l.b16 %v46
    %v62 = vpack.c.b16 %v59, %v58
    %v63 = vpack.c.b16 %v61, %v60
    %vm66 = vcmask 261120
    %v68 = vsel %vm66, %v42, 0
    %70 = vmatprep.subr.bf16.mxu0 0
    %71 = vmatpush1.bf16.msra.mxu0 %v62
    %72 = vmatprep.subr.bf16.mxu0 0
    %73 = vmatpush1.bf16.msra.mxu0 %v63
    %74 = vmatprep.subr.bf16.mxu0 0
    %75 = vmatpush1.bf16.msra.mxu0 0
    %76 = vmatprep.subr.bf16.mxu0 0
    %77 = vmatpush1.bf16.msra.mxu0 0
    %78 = vmatprep.subr.bf16.mxu0 0
    %79 = vmatpush1.bf16.msra.mxu0 0
    %80 = vmatprep.subr.bf16.mxu0 0
    %81 = vmatpush1.bf16.msra.mxu0 0
    %82 = vmatprep.subr.bf16.mxu0 0
    %83 = vmatpush1.bf16.msra.mxu0 0
    %84 = vmatprep.subr.bf16.mxu0 0
    %85 = vmatpush1.bf16.msra.mxu0 0
    %86 = vmatprep.subr.bf16.mxu0 0
    %87 = vmatpush1.bf16.msra.mxu0 0
    %88 = vmatprep.subr.bf16.mxu0 0
    %89 = vmatpush1.bf16.msra.mxu0 0
    %90 = vmatprep.subr.bf16.mxu0 0
    %91 = vmatpush1.bf16.msra.mxu0 0
    %92 = vmatprep.subr.bf16.mxu0 0
    %93 = vmatpush1.bf16.msra.mxu0 0
    %94 = vmatprep.subr.bf16.mxu0 0
    %95 = vmatpush1.bf16.msra.mxu0 0
    %96 = vmatprep.subr.bf16.mxu0 0
    %97 = vmatpush1.bf16.msra.mxu0 0
    %98 = vmatprep.subr.bf16.mxu0 0
    %99 = vmatpush1.bf16.msra.mxu0 0
    %100 = vmatprep.subr.bf16.mxu0 0
    %101 = vmatpush1.bf16.msra.mxu0 0
    %102 = vmatprep.mubr.bf16.mxu0 0
    %103 = vmatmul.mubr.bf16.gmra.mrb[0].mxu0 %v68
    %v104 = vpop.f32.mrb[0].mxu0
    %v105 = vadd.f32 %v52, %v104
    %v106 = vpop.f32.mrb[0].mxu0
    %v107 = vpop.f32.mrb[0].mxu0
    %v108 = vpop.f32.mrb[0].mxu0
    %109 = vdwg.mxu0
    %vm110 = vcmp.ge.f32.partialorder %v105, 0.0
    %v111 = vmul.f32 %v105, 0.01
    %v112 = vsel %vm110, %v105, %v111
    %v113 = vpack.c.bf16 %v112, %v112
    %v114 = vld [vmem:[%s3] sm:$0xff]
    %v115 = vld [vmem:[%s3 + $0x8] sm:$0xff]
    %v116 = vld [vmem:[%s3 + $0x10] sm:$0xff]
    %v117 = vld [vmem:[%s3 + $0x18] sm:$0xff]
    %v118 = vld [vmem:[%s3 + $0x20] sm:$0xff]
    %v119 = vld [vmem:[%s3 + $0x28] sm:$0xff]
    %v120 = vld [vmem:[%s3 + $0x30] sm:$0xff]
    %v121 = vld [vmem:[%s3 + $0x38] sm:$0xff]
    %v122 = vld [vmem:[%s3 + $0x40] sm:$0xff]
    %v123 = vld [vmem:[%s3 + $0x48] sm:$0xff]
    %v124 = vld [vmem:[%s3 + $0x50] sm:$0xff]
    %v125 = vld [vmem:[%s3 + $0x58] sm:$0xff]
    %v126 = vld [vmem:[%s3 + $0x60] sm:$0xff]
    %v127 = vld [vmem:[%s3 + $0x68] sm:$0xff]
    %v128 = vld [vmem:[%s3 + $0x70] sm:$0xff]
    %v129 = vld [vmem:[%s3 + $0x78] sm:$0xff]
    %v130 = vld [vmem:[%s4] sm:$0x3]
    %v132 = vlaneseq
    %v133 = vshrl.u32 %v132, 7
    %v134 = vsub.s32 0, %v133
    %v135 = vrot.slane %v130, %v134
    %v136 = vlaneseq
    %v137 = vshrl.u32 %v136, 7
    %v138 = vsub.s32 1, %v137
    %v139 = vrot.slane %v130, %v138
    %v158 = vunpack.c.l.b16 %v114
    %v159 = vunpack.c.h.b16 %v114
    %v160 = vunpack.c.l.b16 %v115
    %v161 = vunpack.c.h.b16 %v115
    %v162 = vunpack.c.l.b16 %v116
    %v163 = vunpack.c.h.b16 %v116
    %v164 = vunpack.c.l.b16 %v117
    %v165 = vunpack.c.h.b16 %v117
    %v166 = vunpack.c.l.b16 %v118
    %v167 = vunpack.c.h.b16 %v118
    %v168 = vunpack.c.l.b16 %v119
    %v169 = vunpack.c.h.b16 %v119
    %v170 = vunpack.c.l.b16 %v120
    %v171 = vunpack.c.h.b16 %v120
    %v172 = vunpack.c.l.b16 %v121
    %v173 = vunpack.c.h.b16 %v121
    %v174 = vunpack.c.l.b16 %v122
    %v175 = vunpack.c.h.b16 %v122
    %v176 = vunpack.c.l.b16 %v123
    %v177 = vunpack.c.h.b16 %v123
    %v178 = vunpack.c.l.b16 %v124
    %v179 = vunpack.c.h.b16 %v124
    %v180 = vunpack.c.l.b16 %v125
    %v181 = vunpack.c.h.b16 %v125
    %v182 = vunpack.c.l.b16 %v126
    %v183 = vunpack.c.h.b16 %v126
    %v184 = vunpack.c.l.b16 %v127
    %v185 = vunpack.c.h.b16 %v127
    %v186 = vunpack.c.l.b16 %v128
    %v187 = vunpack.c.h.b16 %v128
    %v188 = vunpack.c.l.b16 %v129
    %v189 = vunpack.c.h.b16 %v129
    %v190 = vpack.c.b16 %v160, %v158
    %v191 = vpack.c.b16 %v161, %v159
    %v192 = vpack.c.b16 %v164, %v162
    %v193 = vpack.c.b16 %v165, %v163
    %v194 = vpack.c.b16 %v168, %v166
    %v195 = vpack.c.b16 %v169, %v167
    %v196 = vpack.c.b16 %v172, %v170
    %v197 = vpack.c.b16 %v173, %v171
    %v198 = vpack.c.b16 %v176, %v174
    %v199 = vpack.c.b16 %v177, %v175
    %v200 = vpack.c.b16 %v180, %v178
    %v201 = vpack.c.b16 %v181, %v179
    %v202 = vpack.c.b16 %v184, %v182
    %v203 = vpack.c.b16 %v185, %v183
    %v204 = vpack.c.b16 %v188, %v186
    %v205 = vpack.c.b16 %v189, %v187
    %222 = vmatprep.subr.bf16.mxu0 %v191
    %223 = vmatpush1.bf16.msra.mxu0 %v190
    %224 = vmatprep.subr.bf16.mxu0 %v193
    %225 = vmatpush1.bf16.msra.mxu0 %v192
    %226 = vmatprep.subr.bf16.mxu0 %v195
    %227 = vmatpush1.bf16.msra.mxu0 %v194
    %228 = vmatprep.subr.bf16.mxu0 %v197
    %229 = vmatpush1.bf16.msra.mxu0 %v196
    %230 = vmatprep.subr.bf16.mxu0 %v199
    %231 = vmatpush1.bf16.msra.mxu0 %v198
    %232 = vmatprep.subr.bf16.mxu0 %v201
    %233 = vmatpush1.bf16.msra.mxu0 %v200
    %234 = vmatprep.subr.bf16.mxu0 %v203
    %235 = vmatpush1.bf16.msra.mxu0 %v202
    %236 = vmatprep.subr.bf16.mxu0 %v205
    %237 = vmatpush1.bf16.msra.mxu0 %v204
    %238 = vmatprep.subr.bf16.mxu0 0
    %239 = vmatpush1.bf16.msra.mxu0 0
    %240 = vmatprep.subr.bf16.mxu0 0
    %241 = vmatpush1.bf16.msra.mxu0 0
    %242 = vmatprep.subr.bf16.mxu0 0
    %243 = vmatpush1.bf16.msra.mxu0 0
    %244 = vmatprep.subr.bf16.mxu0 0
    %245 = vmatpush1.bf16.msra.mxu0 0
    %246 = vmatprep.subr.bf16.mxu0 0
    %247 = vmatpush1.bf16.msra.mxu0 0
    %248 = vmatprep.subr.bf16.mxu0 0
    %249 = vmatpush1.bf16.msra.mxu0 0
    %250 = vmatprep.subr.bf16.mxu0 0
    %251 = vmatpush1.bf16.msra.mxu0 0
    %252 = vmatprep.subr.bf16.mxu0 0
    %253 = vmatpush1.bf16.msra.mxu0 0
    %254 = vmatprep.mubr.bf16.mxu0 0
    %255 = vmatmul.mubr.bf16.gmra.mrb[0].mxu0 %v113
    %v256 = vpop.f32.mrb[0].mxu0
    %v257 = vadd.f32 %v135, %v256
    %v258 = vpop.f32.mrb[0].mxu0
    %v259 = vadd.f32 %v139, %v258
    %v260 = vpop.f32.mrb[0].mxu0
    %v261 = vpop.f32.mrb[0].mxu0
    %262 = vdwg.mxu0
    %vm263 = vcmp.ge.f32.partialorder %v257, 0.0
    %vm264 = vcmp.ge.f32.partialorder %v259, 0.0
    %v265 = vmul.f32 %v257, 0.01
    %v266 = vmul.f32 %v259, 0.01
    %v267 = vsel %vm263, %v257, %v265
    %v268 = vsel %vm264, %v259, %v266
    %v269 = vpack.c.bf16 %v267, %v267
    %v270 = vpack.c.bf16 %v268, %v268
    %v271 = vld [vmem:[%s5] sm:$0xf]
    %v272 = vld [vmem:[%s5 + $0x4] sm:$0xf]
    %v273 = vld [vmem:[%s5 + $0x8] sm:$0xf]
    %v274 = vld [vmem:[%s5 + $0xc] sm:$0xf]
    %v275 = vld [vmem:[%s5 + $0x10] sm:$0xf]
    %v276 = vld [vmem:[%s5 + $0x14] sm:$0xf]
    %v277 = vld [vmem:[%s5 + $0x18] sm:$0xf]
    %v278 = vld [vmem:[%s5 + $0x1c] sm:$0xf]
    %v279 = vld [vmem:[%s5 + $0x20] sm:$0xf]
    %v280 = vld [vmem:[%s5 + $0x24] sm:$0xf]
    %v281 = vld [vmem:[%s5 + $0x28] sm:$0xf]
    %v282 = vld [vmem:[%s5 + $0x2c] sm:$0xf]
    %v283 = vld [vmem:[%s5 + $0x30] sm:$0xf]
    %v284 = vld [vmem:[%s5 + $0x34] sm:$0xf]
    %v285 = vld [vmem:[%s5 + $0x38] sm:$0xf]
    %v286 = vld [vmem:[%s5 + $0x3c] sm:$0xf]
    %v287 = vld [vmem:[%s5 + $0x40] sm:$0xf]
    %v288 = vld [vmem:[%s5 + $0x44] sm:$0xf]
    %v289 = vld [vmem:[%s5 + $0x48] sm:$0xf]
    %v290 = vld [vmem:[%s5 + $0x4c] sm:$0xf]
    %v291 = vld [vmem:[%s5 + $0x50] sm:$0xf]
    %v292 = vld [vmem:[%s5 + $0x54] sm:$0xf]
    %v293 = vld [vmem:[%s5 + $0x58] sm:$0xf]
    %v294 = vld [vmem:[%s5 + $0x5c] sm:$0xf]
    %v295 = vld [vmem:[%s5 + $0x60] sm:$0xf]
    %v296 = vld [vmem:[%s5 + $0x64] sm:$0xf]
    %v297 = vld [vmem:[%s5 + $0x68] sm:$0xf]
    %v298 = vld [vmem:[%s5 + $0x6c] sm:$0xf]
    %v299 = vld [vmem:[%s5 + $0x70] sm:$0xf]
    %v300 = vld [vmem:[%s5 + $0x74] sm:$0xf]
    %v301 = vld [vmem:[%s5 + $0x78] sm:$0xf]
    %v302 = vld [vmem:[%s5 + $0x7c] sm:$0xf]
    %v303 = vld [vmem:[%s6] sm:$0x1]
    %v305 = vlaneseq
    %v306 = vshrl.u32 %v305, 7
    %v307 = vsub.s32 0, %v306
    %v308 = vrot.slane %v303, %v307
    %v342 = vunpack.c.l.b16 %v271
    %v343 = vunpack.c.l.b16 %v272
    %v344 = vunpack.c.l.b16 %v273
    %v345 = vunpack.c.l.b16 %v274
    %v346 = vunpack.c.l.b16 %v275
    %v347 = vunpack.c.l.b16 %v276
    %v348 = vunpack.c.l.b16 %v277
    %v349 = vunpack.c.l.b16 %v278
    %v350 = vunpack.c.l.b16 %v279
    %v351 = vunpack.c.l.b16 %v280
    %v352 = vunpack.c.l.b16 %v281
    %v353 = vunpack.c.l.b16 %v282
    %v354 = vunpack.c.l.b16 %v283
    %v355 = vunpack.c.l.b16 %v284
    %v356 = vunpack.c.l.b16 %v285
    %v357 = vunpack.c.l.b16 %v286
    %v358 = vunpack.c.l.b16 %v287
    %v359 = vunpack.c.l.b16 %v288
    %v360 = vunpack.c.l.b16 %v289
    %v361 = vunpack.c.l.b16 %v290
    %v362 = vunpack.c.l.b16 %v291
    %v363 = vunpack.c.l.b16 %v292
    %v364 = vunpack.c.l.b16 %v293
    %v365 = vunpack.c.l.b16 %v294
    %v366 = vunpack.c.l.b16 %v295
    %v367 = vunpack.c.l.b16 %v296
    %v368 = vunpack.c.l.b16 %v297
    %v369 = vunpack.c.l.b16 %v298
    %v370 = vunpack.c.l.b16 %v299
    %v371 = vunpack.c.l.b16 %v300
    %v372 = vunpack.c.l.b16 %v301
    %v373 = vunpack.c.l.b16 %v302
    %v374 = vpack.c.b16 %v343, %v342
    %v375 = vpack.c.b16 %v345, %v344
    %v376 = vpack.c.b16 %v347, %v346
    %v377 = vpack.c.b16 %v349, %v348
    %v378 = vpack.c.b16 %v351, %v350
    %v379 = vpack.c.b16 %v353, %v352
    %v380 = vpack.c.b16 %v355, %v354
    %v381 = vpack.c.b16 %v357, %v356
    %v382 = vpack.c.b16 %v359, %v358
    %v383 = vpack.c.b16 %v361, %v360
    %v384 = vpack.c.b16 %v363, %v362
    %v385 = vpack.c.b16 %v365, %v364
    %v386 = vpack.c.b16 %v367, %v366
    %v387 = vpack.c.b16 %v369, %v368
    %v388 = vpack.c.b16 %v371, %v370
    %v389 = vpack.c.b16 %v373, %v372
    %406 = vmatprep.subr.bf16.mxu0 0
    %407 = vmatpush1.bf16.msra.mxu0 %v374
    %408 = vmatprep.subr.bf16.mxu0 0
    %409 = vmatpush1.bf16.msra.mxu0 %v375
    %410 = vmatprep.subr.bf16.mxu0 0
    %411 = vmatpush1.bf16.msra.mxu0 %v376
    %412 = vmatprep.subr.bf16.mxu0 0
    %413 = vmatpush1.bf16.msra.mxu0 %v377
    %414 = vmatprep.subr.bf16.mxu0 0
    %415 = vmatpush1.bf16.msra.mxu0 %v378
    %416 = vmatprep.subr.bf16.mxu0 0
    %417 = vmatpush1.bf16.msra.mxu0 %v379
    %418 = vmatprep.subr.bf16.mxu0 0
    %419 = vmatpush1.bf16.msra.mxu0 %v380
    %420 = vmatprep.subr.bf16.mxu0 0
    %421 = vmatpush1.bf16.msra.mxu0 %v381
    %422 = vmatprep.subr.bf16.mxu0 0
    %423 = vmatpush1.bf16.msra.mxu0 %v382
    %424 = vmatprep.subr.bf16.mxu0 0
    %425 = vmatpush1.bf16.msra.mxu0 %v383
    %426 = vmatprep.subr.bf16.mxu0 0
    %427 = vmatpush1.bf16.msra.mxu0 %v384
    %428 = vmatprep.subr.bf16.mxu0 0
    %429 = vmatpush1.bf16.msra.mxu0 %v385
    %430 = vmatprep.subr.bf16.mxu0 0
    %431 = vmatpush1.bf16.msra.mxu0 %v386
    %432 = vmatprep.subr.bf16.mxu0 0
    %433 = vmatpush1.bf16.msra.mxu0 %v387
    %434 = vmatprep.subr.bf16.mxu0 0
    %435 = vmatpush1.bf16.msra.mxu0 %v388
    %436 = vmatprep.subr.bf16.mxu0 0
    %437 = vmatpush1.bf16.msra.mxu0 %v389
    %438 = vmatprep.mubr.bf16.mxu0 %v270
    %439 = vmatmul.mubr.bf16.gmra.mrb[0].mxu0 %v269
    %v440 = vpop.f32.mrb[0].mxu0
    %v441 = vadd.f32 %v308, %v440
    %v442 = vpop.f32.mrb[0].mxu0
    %v443 = vpop.f32.mrb[0].mxu0
    %v444 = vpop.f32.mrb[0].mxu0
    %445 = vdwg.mxu0
    %v446 = vsub.f32 0.0, %v441
    %v447 = vmul.f32 %v446, 1.442695
    %v448 = vpow.pop %v447
    %v449 = vadd.f32 %v448, 1.0
    %v450 = vrcp.pop %v449
    %vm451 = vcmask 31744
    %452 = vst.msk [vmem:[%s7] sm:$0xff] %vm451, %v450
    // Predicated region
    $region34: #{net_forward.1} parent=1 // pred_check
      _
    $region35: #{net_forward.1} parent=1 // pred_check_branch
      %454 = sbr.rel (0) target = $region37
    $region36: #{net_forward.1} parent=1 // pred_region
      _
    $region37: #{net_forward.1} parent=1 // pred_fallthru
      _
    // Predicated region
    $region38: #{net_forward.1} parent=1 // pred_check
      _
    $region39: #{net_forward.1} parent=1 // pred_check_branch
      %456 = sbr.rel (0) target = $region41
    $region40: #{net_forward.1} parent=1 // pred_region
      _
    $region41: #{net_forward.1} parent=1 // pred_fallthru
      _
    %457 = vsyncpa [#allocation3], 1

</llo_original>
